<compile_context>
chip_gen: v7x
topology: tpu7x:2x2x1
jax: 0.10.0
libtpu: 0.0.40
codegen_flags: <defaults>
</compile_context>

<pallas_src>
import jax
import jax.numpy as jnp
from jax.experimental import pallas as pl
from jax.experimental.pallas import tpu as pltpu


def _round_up(x, m):
    return ((x + m - 1) // m) * m


def _num_grid_groups(n_batch):
    """v7x has 2 TensorCores/chip: keep >=2 parallel grid steps so both get
    work. v5e/v6e have 1 TC: a single fat step minimizes per-step overhead."""
    try:
        kind = jax.devices()[0].device_kind.lower()
    except Exception:  # pragma: no cover - defensive only
        kind = ""
    num_cores = 2 if "v7" in kind else 1
    return max(1, min(n_batch, num_cores))


def conv3x3_im2col_pallas(x_flat, w_mat, bias2, *, Cin_pad, Cout, H, Wp, B,
                          compute_dtype, out_dtype):
    """3x3 conv (stride 1, pad 1) via one im2col matmul per group of B images.

    x_flat: (Npad, Cin_pad, Lx) row-padded, row-flattened input (Wp-wide rows).
    w_mat:  (Cout, 9*Cin_pad) with column index (dy*3 + dx)*Cin_pad + ci.
    bias2:  (Cout, 1) float32.
    Returns (Npad, Cout, H*Wp); column w of each Wp-wide row is valid for w<W.
    """
    Npad = x_flat.shape[0]
    G = Npad // B
    L = H * Wp                      # output lanes per image (incl. junk cols)
    Lx = x_flat.shape[2]            # (H+3) * Wp
    Kp = 9 * Cin_pad

    def kernel(x_ref, w_ref, b_ref, o_ref, patch_ref):
        # x_ref:     (B, Cin_pad, Lx)
        # w_ref:     (Cout, Kp)
        # b_ref:     (Cout, 1)
        # o_ref:     (B, Cout, L)
        # patch_ref: (Kp, B*L) im2col scratch
        #
        # Build the im2col matrix: every tap of every image is one contiguous,
        # 8-sublane-aligned, 128-lane-aligned store of a static slice.
        for b in range(B):
            for dy in range(3):
                for dx in range(3):
                    tap = dy * 3 + dx
                    t = dy * Wp + dx            # static lane offset of the tap
                    patch_ref[tap * Cin_pad:(tap + 1) * Cin_pad,
                              b * L:(b + 1) * L] = x_ref[b, :, t:t + L]

        # Single MXU push for the whole group.
        acc = jnp.dot(w_ref[...], patch_ref[...],
                      preferred_element_type=jnp.float32)       # (Cout, B*L)
        acc = acc + b_ref[...]                                  # bias over lanes
        for b in range(B):
            o_ref[b] = acc[:, b * L:(b + 1) * L].astype(o_ref.dtype)

    return pl.pallas_call(
        kernel,
        out_shape=jax.ShapeDtypeStruct((Npad, Cout, L), out_dtype),
        grid_spec=pltpu.PrefetchScalarGridSpec(
            num_scalar_prefetch=0,
            grid=(G,),
            in_specs=[
                pl.BlockSpec((B, Cin_pad, Lx), lambda g: (g, 0, 0)),
                pl.BlockSpec((Cout, Kp), lambda g: (0, 0)),
                pl.BlockSpec((Cout, 1), lambda g: (0, 0)),
            ],
            out_specs=pl.BlockSpec((B, Cout, L), lambda g: (g, 0, 0)),
            scratch_shapes=[pltpu.VMEM((Kp, B * L), compute_dtype)],
        ),
        compiler_params=pltpu.CompilerParams(
            dimension_semantics=("parallel",)),
    )(x_flat, w_mat, bias2)


def upsample_block(x_nchw, w_oihw, bias, upscale_factor,
                   compute_dtype=jnp.float32):
    """Forward of UpsampleBlock: Conv2d(C, C*r*r, 3, 1, 1) -> PixelShuffle(r).

    x_nchw: (N, C, H, W) -> (N, C, H*r, W*r), matching PyTorch semantics.
    compute_dtype: set to jnp.bfloat16 for MXU-native throughput at large
    sizes (loosens numerics); f32 by default to match the PyTorch module.
    """
    N, Cin, H, W = x_nchw.shape
    Cout = w_oihw.shape[0]
    r = upscale_factor

    # Lane-dense flattened row width: smallest Wp >= W+2 with H*Wp % 128 == 0.
    Wp = W + 2
    while (H * Wp) % 128 != 0:
        Wp += 1
    Hp = H + 3                      # 1 top halo + 2 bottom slack rows
    Lx = Hp * Wp

    Cin_pad = _round_up(Cin, 8)     # sublane-aligned per-tap stores

    G = _num_grid_groups(N)         # grid steps (2 on v7x, else 1)
    B = -(-N // G)                  # images per step
    Npad = G * B

    # One pad pass: conv halo (1 top / 1 left), lane-density padding on the
    # right, 2 slack rows at the bottom so every tap's length-L lane slice
    # stays in bounds, zero channels up to Cin_pad, zero images up to Npad.
    x_pad = jnp.pad(x_nchw.astype(compute_dtype),
                    ((0, Npad - N), (0, Cin_pad - Cin),
                     (1, 2), (1, Wp - W - 1)))
    x_flat = x_pad.reshape(Npad, Cin_pad, Lx)

    # (Cout, Cin, 3, 3) -> (Cout, 9*Cin_pad), column (dy*3+dx)*Cin_pad + ci.
    # Padded-channel columns are zero, matching the zero-padded input channels.
    w_pad = jnp.pad(w_oihw, ((0, 0), (0, Cin_pad - Cin), (0, 0), (0, 0)))
    w_mat = jnp.transpose(w_pad, (0, 2, 3, 1)).reshape(Cout, 9 * Cin_pad)
    w_mat = w_mat.astype(compute_dtype)
    bias2 = bias.reshape(Cout, 1).astype(jnp.float32)

    y_flat = conv3x3_im2col_pallas(
        x_flat, w_mat, bias2, Cin_pad=Cin_pad, Cout=Cout, H=H, Wp=Wp, B=B,
        compute_dtype=compute_dtype, out_dtype=x_nchw.dtype)

    # Crop the junk columns / padded batch, then PixelShuffle (layout glue).
    y = y_flat.reshape(Npad, Cout, H, Wp)[:N, :, :, :W]         # (N, C*r*r, H, W)
    C = Cout // (r * r)
    y = y.reshape(N, C, r, r, H, W)                             # (n, c, i, j, h, w)
    y = jnp.transpose(y, (0, 1, 4, 2, 5, 3))                    # (n, c, h, i, w, j)
    return y.reshape(N, C, H * r, W * r)


def _reference(x_nchw, w_oihw, bias, r):
    """Pure-JAX reference (XLA conv + pixel shuffle) for correctness check."""
    y = jax.lax.conv_general_dilated(
        x_nchw, w_oihw, window_strides=(1, 1), padding=((1, 1), (1, 1)),
        dimension_numbers=("NCHW", "OIHW", "NCHW"),
        precision=jax.lax.Precision.HIGHEST)
    y = y + bias.reshape(1, -1, 1, 1)
    N, Crr, H, W = y.shape
    C = Crr // (r * r)
    y = y.reshape(N, C, r, r, H, W)
    y = jnp.transpose(y, (0, 1, 4, 2, 5, 3))
    return y.reshape(N, C, H * r, W * r)


if __name__ == "__main__":
    channels = 4
    upscale_factor = 2
    N, H, W = 2, 16, 16
    Cout = channels * upscale_factor * upscale_factor

    key = jax.random.PRNGKey(0)
    kx, kw, kb = jax.random.split(key, 3)

    x = jax.random.normal(kx, (N, channels, H, W), dtype=jnp.float32)
    # Conv2d-shaped params: weight (Cout, Cin, 3, 3), bias (Cout,)
    fan_in = channels * 3 * 3
    bound = 1.0 / (fan_in ** 0.5)
    w = jax.random.uniform(kw, (Cout, channels, 3, 3), jnp.float32, -bound, bound)
    b = jax.random.uniform(kb, (Cout,), jnp.float32, -bound, bound)

    out = jax.jit(upsample_block, static_argnums=(3,))(x, w, b, upscale_factor)
    out = jax.block_until_ready(out)

    ref = _reference(x, w, b, upscale_factor)
    assert out.shape == (N, channels, H * upscale_factor, W * upscale_factor), out.shape
    # Tolerance accommodates MXU default-precision matmul vs HIGHEST reference.
    assert jnp.allclose(out, ref, atol=1e-2, rtol=1e-2), float(
        jnp.max(jnp.abs(out - ref)))

    print("KERNEL_OK")
</pallas_src>

<mosaic_0001>
module attributes {stable_mosaic.version = 11 : i64} {
  func.func @kernel(%arg0: i32, %arg1: memref<2x8x456xf32, #tpu.memory_space<vmem>>, %arg2: memref<16x72xf32, #tpu.memory_space<vmem>>, %arg3: memref<16x1xf32, #tpu.memory_space<vmem>>, %arg4: memref<2x16x384xf32, #tpu.memory_space<vmem>>, %arg5: memref<72x768xf32, #tpu.memory_space<vmem>>) attributes {dimension_semantics = [#tpu.dimension_semantics<parallel>], iteration_bounds = array<i64: 1>, scalar_prefetch = 0 : i64, scratch_operands = 1 : i64, tpu.core_type = #tpu.core_type<tc>, window_params = [{transform_indices = @transform_0, window_bounds = array<i64: 2, 8, 456>}, {pipeline_mode = #tpu.pipeline_mode<synchronous>, transform_indices = @transform_1, window_bounds = array<i64: 16, 72>}, {pipeline_mode = #tpu.pipeline_mode<synchronous>, transform_indices = @transform_2, window_bounds = array<i64: 16, 1>}, {transform_indices = @transform_3, window_bounds = array<i64: 2, 16, 384>}]} {
    %c0 = arith.constant 0 : index
    %c0_0 = arith.constant 0 : index
    %c0_1 = arith.constant 0 : index
    %0 = vector.load %arg1[%c0, %c0_0, %c0_1] : memref<2x8x456xf32, #tpu.memory_space<vmem>>, vector<1x8x384xf32>
    %1 = vector.shape_cast %0 : vector<1x8x384xf32> to vector<8x384xf32>
    %c0_2 = arith.constant 0 : index
    %c0_3 = arith.constant 0 : index
    %2 = vector.load %arg5[%c0_2, %c0_3] : memref<72x768xf32, #tpu.memory_space<vmem>>, vector<8x384xf32>
    tpu.vector_store %arg5[%c0_2, %c0_3], %1 {strides = array<i32>} : memref<72x768xf32, #tpu.memory_space<vmem>>, vector<8x384xf32>,
    %c0_4 = arith.constant 0 : index
    %c0_5 = arith.constant 0 : index
    %c1 = arith.constant 1 : index
    %3 = vector.load %arg1[%c0_4, %c0_5, %c1] : memref<2x8x456xf32, #tpu.memory_space<vmem>>, vector<1x8x384xf32>
    %4 = vector.shape_cast %3 : vector<1x8x384xf32> to vector<8x384xf32>
    %c8 = arith.constant 8 : index
    %c0_6 = arith.constant 0 : index
    %5 = vector.load %arg5[%c8, %c0_6] : memref<72x768xf32, #tpu.memory_space<vmem>>, vector<8x384xf32>
    tpu.vector_store %arg5[%c8, %c0_6], %4 {strides = array<i32>} : memref<72x768xf32, #tpu.memory_space<vmem>>, vector<8x384xf32>,
    %c0_7 = arith.constant 0 : index
    %c0_8 = arith.constant 0 : index
    %c2 = arith.constant 2 : index
    %6 = vector.load %arg1[%c0_7, %c0_8, %c2] : memref<2x8x456xf32, #tpu.memory_space<vmem>>, vector<1x8x384xf32>
    %7 = vector.shape_cast %6 : vector<1x8x384xf32> to vector<8x384xf32>
    %c16 = arith.constant 16 : index
    %c0_9 = arith.constant 0 : index
    %8 = vector.load %arg5[%c16, %c0_9] : memref<72x768xf32, #tpu.memory_space<vmem>>, vector<8x384xf32>
    tpu.vector_store %arg5[%c16, %c0_9], %7 {strides = array<i32>} : memref<72x768xf32, #tpu.memory_space<vmem>>, vector<8x384xf32>,
    %c0_10 = arith.constant 0 : index
    %c0_11 = arith.constant 0 : index
    %c24 = arith.constant 24 : index
    %9 = vector.load %arg1[%c0_10, %c0_11, %c24] : memref<2x8x456xf32, #tpu.memory_space<vmem>>, vector<1x8x384xf32>
    %10 = vector.shape_cast %9 : vector<1x8x384xf32> to vector<8x384xf32>
    %c24_12 = arith.constant 24 : index
    %c0_13 = arith.constant 0 : index
    %11 = vector.load %arg5[%c24_12, %c0_13] : memref<72x768xf32, #tpu.memory_space<vmem>>, vector<8x384xf32>
    tpu.vector_store %arg5[%c24_12, %c0_13], %10 {strides = array<i32>} : memref<72x768xf32, #tpu.memory_space<vmem>>, vector<8x384xf32>,
    %c0_14 = arith.constant 0 : index
    %c0_15 = arith.constant 0 : index
    %c25 = arith.constant 25 : index
    %12 = vector.load %arg1[%c0_14, %c0_15, %c25] : memref<2x8x456xf32, #tpu.memory_space<vmem>>, vector<1x8x384xf32>
    %13 = vector.shape_cast %12 : vector<1x8x384xf32> to vector<8x384xf32>
    %c32 = arith.constant 32 : index
    %c0_16 = arith.constant 0 : index
    %14 = vector.load %arg5[%c32, %c0_16] : memref<72x768xf32, #tpu.memory_space<vmem>>, vector<8x384xf32>
    tpu.vector_store %arg5[%c32, %c0_16], %13 {strides = array<i32>} : memref<72x768xf32, #tpu.memory_space<vmem>>, vector<8x384xf32>,
    %c0_17 = arith.constant 0 : index
    %c0_18 = arith.constant 0 : index
    %c26 = arith.constant 26 : index
    %15 = vector.load %arg1[%c0_17, %c0_18, %c26] : memref<2x8x456xf32, #tpu.memory_space<vmem>>, vector<1x8x384xf32>
    %16 = vector.shape_cast %15 : vector<1x8x384xf32> to vector<8x384xf32>
    %c40 = arith.constant 40 : index
    %c0_19 = arith.constant 0 : index
    %17 = vector.load %arg5[%c40, %c0_19] : memref<72x768xf32, #tpu.memory_space<vmem>>, vector<8x384xf32>
    tpu.vector_store %arg5[%c40, %c0_19], %16 {strides = array<i32>} : memref<72x768xf32, #tpu.memory_space<vmem>>, vector<8x384xf32>,
    %c0_20 = arith.constant 0 : index
    %c0_21 = arith.constant 0 : index
    %c48 = arith.constant 48 : index
    %18 = vector.load %arg1[%c0_20, %c0_21, %c48] : memref<2x8x456xf32, #tpu.memory_space<vmem>>, vector<1x8x384xf32>
    %19 = vector.shape_cast %18 : vector<1x8x384xf32> to vector<8x384xf32>
    %c48_22 = arith.constant 48 : index
    %c0_23 = arith.constant 0 : index
    %20 = vector.load %arg5[%c48_22, %c0_23] : memref<72x768xf32, #tpu.memory_space<vmem>>, vector<8x384xf32>
    tpu.vector_store %arg5[%c48_22, %c0_23], %19 {strides = array<i32>} : memref<72x768xf32, #tpu.memory_space<vmem>>, vector<8x384xf32>,
    %c0_24 = arith.constant 0 : index
    %c0_25 = arith.constant 0 : index
    %c49 = arith.constant 49 : index
    %21 = vector.load %arg1[%c0_24, %c0_25, %c49] : memref<2x8x456xf32, #tpu.memory_space<vmem>>, vector<1x8x384xf32>
    %22 = vector.shape_cast %21 : vector<1x8x384xf32> to vector<8x384xf32>
    %c56 = arith.constant 56 : index
    %c0_26 = arith.constant 0 : index
    %23 = vector.load %arg5[%c56, %c0_26] : memref<72x768xf32, #tpu.memory_space<vmem>>, vector<8x384xf32>
    tpu.vector_store %arg5[%c56, %c0_26], %22 {strides = array<i32>} : memref<72x768xf32, #tpu.memory_space<vmem>>, vector<8x384xf32>,
    %c0_27 = arith.constant 0 : index
    %c0_28 = arith.constant 0 : index
    %c50 = arith.constant 50 : index
    %24 = vector.load %arg1[%c0_27, %c0_28, %c50] : memref<2x8x456xf32, #tpu.memory_space<vmem>>, vector<1x8x384xf32>
    %25 = vector.shape_cast %24 : vector<1x8x384xf32> to vector<8x384xf32>
    %c64 = arith.constant 64 : index
    %c0_29 = arith.constant 0 : index
    %26 = vector.load %arg5[%c64, %c0_29] : memref<72x768xf32, #tpu.memory_space<vmem>>, vector<8x384xf32>
    tpu.vector_store %arg5[%c64, %c0_29], %25 {strides = array<i32>} : memref<72x768xf32, #tpu.memory_space<vmem>>, vector<8x384xf32>,
    %c1_30 = arith.constant 1 : index
    %c0_31 = arith.constant 0 : index
    %c0_32 = arith.constant 0 : index
    %27 = vector.load %arg1[%c1_30, %c0_31, %c0_32] : memref<2x8x456xf32, #tpu.memory_space<vmem>>, vector<1x8x384xf32>
    %28 = vector.shape_cast %27 : vector<1x8x384xf32> to vector<8x384xf32>
    %c0_33 = arith.constant 0 : index
    %c384 = arith.constant 384 : index
    %29 = vector.load %arg5[%c0_33, %c384] : memref<72x768xf32, #tpu.memory_space<vmem>>, vector<8x384xf32>
    tpu.vector_store %arg5[%c0_33, %c384], %28 {strides = array<i32>} : memref<72x768xf32, #tpu.memory_space<vmem>>, vector<8x384xf32>,
    %c1_34 = arith.constant 1 : index
    %c0_35 = arith.constant 0 : index
    %c1_36 = arith.constant 1 : index
    %30 = vector.load %arg1[%c1_34, %c0_35, %c1_36] : memref<2x8x456xf32, #tpu.memory_space<vmem>>, vector<1x8x384xf32>
    %31 = vector.shape_cast %30 : vector<1x8x384xf32> to vector<8x384xf32>
    %c8_37 = arith.constant 8 : index
    %c384_38 = arith.constant 384 : index
    %32 = vector.load %arg5[%c8_37, %c384_38] : memref<72x768xf32, #tpu.memory_space<vmem>>, vector<8x384xf32>
    tpu.vector_store %arg5[%c8_37, %c384_38], %31 {strides = array<i32>} : memref<72x768xf32, #tpu.memory_space<vmem>>, vector<8x384xf32>,
    %c1_39 = arith.constant 1 : index
    %c0_40 = arith.constant 0 : index
    %c2_41 = arith.constant 2 : index
    %33 = vector.load %arg1[%c1_39, %c0_40, %c2_41] : memref<2x8x456xf32, #tpu.memory_space<vmem>>, vector<1x8x384xf32>
    %34 = vector.shape_cast %33 : vector<1x8x384xf32> to vector<8x384xf32>
    %c16_42 = arith.constant 16 : index
    %c384_43 = arith.constant 384 : index
    %35 = vector.load %arg5[%c16_42, %c384_43] : memref<72x768xf32, #tpu.memory_space<vmem>>, vector<8x384xf32>
    tpu.vector_store %arg5[%c16_42, %c384_43], %34 {strides = array<i32>} : memref<72x768xf32, #tpu.memory_space<vmem>>, vector<8x384xf32>,
    %c1_44 = arith.constant 1 : index
    %c0_45 = arith.constant 0 : index
    %c24_46 = arith.constant 24 : index
    %36 = vector.load %arg1[%c1_44, %c0_45, %c24_46] : memref<2x8x456xf32, #tpu.memory_space<vmem>>, vector<1x8x384xf32>
    %37 = vector.shape_cast %36 : vector<1x8x384xf32> to vector<8x384xf32>
    %c24_47 = arith.constant 24 : index
    %c384_48 = arith.constant 384 : index
    %38 = vector.load %arg5[%c24_47, %c384_48] : memref<72x768xf32, #tpu.memory_space<vmem>>, vector<8x384xf32>
    tpu.vector_store %arg5[%c24_47, %c384_48], %37 {strides = array<i32>} : memref<72x768xf32, #tpu.memory_space<vmem>>, vector<8x384xf32>,
    %c1_49 = arith.constant 1 : index
    %c0_50 = arith.constant 0 : index
    %c25_51 = arith.constant 25 : index
    %39 = vector.load %arg1[%c1_49, %c0_50, %c25_51] : memref<2x8x456xf32, #tpu.memory_space<vmem>>, vector<1x8x384xf32>
    %40 = vector.shape_cast %39 : vector<1x8x384xf32> to vector<8x384xf32>
    %c32_52 = arith.constant 32 : index
    %c384_53 = arith.constant 384 : index
    %41 = vector.load %arg5[%c32_52, %c384_53] : memref<72x768xf32, #tpu.memory_space<vmem>>, vector<8x384xf32>
    tpu.vector_store %arg5[%c32_52, %c384_53], %40 {strides = array<i32>} : memref<72x768xf32, #tpu.memory_space<vmem>>, vector<8x384xf32>,
    %c1_54 = arith.constant 1 : index
    %c0_55 = arith.constant 0 : index
    %c26_56 = arith.constant 26 : index
    %42 = vector.load %arg1[%c1_54, %c0_55, %c26_56] : memref<2x8x456xf32, #tpu.memory_space<vmem>>, vector<1x8x384xf32>
    %43 = vector.shape_cast %42 : vector<1x8x384xf32> to vector<8x384xf32>
    %c40_57 = arith.constant 40 : index
    %c384_58 = arith.constant 384 : index
    %44 = vector.load %arg5[%c40_57, %c384_58] : memref<72x768xf32, #tpu.memory_space<vmem>>, vector<8x384xf32>
    tpu.vector_store %arg5[%c40_57, %c384_58], %43 {strides = array<i32>} : memref<72x768xf32, #tpu.memory_space<vmem>>, vector<8x384xf32>,
    %c1_59 = arith.constant 1 : index
    %c0_60 = arith.constant 0 : index
    %c48_61 = arith.constant 48 : index
    %45 = vector.load %arg1[%c1_59, %c0_60, %c48_61] : memref<2x8x456xf32, #tpu.memory_space<vmem>>, vector<1x8x384xf32>
    %46 = vector.shape_cast %45 : vector<1x8x384xf32> to vector<8x384xf32>
    %c48_62 = arith.constant 48 : index
    %c384_63 = arith.constant 384 : index
    %47 = vector.load %arg5[%c48_62, %c384_63] : memref<72x768xf32, #tpu.memory_space<vmem>>, vector<8x384xf32>
    tpu.vector_store %arg5[%c48_62, %c384_63], %46 {strides = array<i32>} : memref<72x768xf32, #tpu.memory_space<vmem>>, vector<8x384xf32>,
    %c1_64 = arith.constant 1 : index
    %c0_65 = arith.constant 0 : index
    %c49_66 = arith.constant 49 : index
    %48 = vector.load %arg1[%c1_64, %c0_65, %c49_66] : memref<2x8x456xf32, #tpu.memory_space<vmem>>, vector<1x8x384xf32>
    %49 = vector.shape_cast %48 : vector<1x8x384xf32> to vector<8x384xf32>
    %c56_67 = arith.constant 56 : index
    %c384_68 = arith.constant 384 : index
    %50 = vector.load %arg5[%c56_67, %c384_68] : memref<72x768xf32, #tpu.memory_space<vmem>>, vector<8x384xf32>
    tpu.vector_store %arg5[%c56_67, %c384_68], %49 {strides = array<i32>} : memref<72x768xf32, #tpu.memory_space<vmem>>, vector<8x384xf32>,
    %c1_69 = arith.constant 1 : index
    %c0_70 = arith.constant 0 : index
    %c50_71 = arith.constant 50 : index
    %51 = vector.load %arg1[%c1_69, %c0_70, %c50_71] : memref<2x8x456xf32, #tpu.memory_space<vmem>>, vector<1x8x384xf32>
    %52 = vector.shape_cast %51 : vector<1x8x384xf32> to vector<8x384xf32>
    %c64_72 = arith.constant 64 : index
    %c384_73 = arith.constant 384 : index
    %53 = vector.load %arg5[%c64_72, %c384_73] : memref<72x768xf32, #tpu.memory_space<vmem>>, vector<8x384xf32>
    tpu.vector_store %arg5[%c64_72, %c384_73], %52 {strides = array<i32>} : memref<72x768xf32, #tpu.memory_space<vmem>>, vector<8x384xf32>,
    %c0_74 = arith.constant 0 : index
    %c0_75 = arith.constant 0 : index
    %54 = vector.load %arg2[%c0_74, %c0_75] : memref<16x72xf32, #tpu.memory_space<vmem>>, vector<16x72xf32>
    %c0_76 = arith.constant 0 : index
    %c0_77 = arith.constant 0 : index
    %55 = vector.load %arg5[%c0_76, %c0_77] : memref<72x768xf32, #tpu.memory_space<vmem>>, vector<72x768xf32>
    %cst = arith.constant dense<0.000000e+00> : vector<16x768xf32>
    %56 = tpu.matmul %54, %55, %cst {dimension_numbers = #tpu.dot_dimension_numbers<[1], [0], [0], [1], [0, 0, 1, 1], [], []>} : vector<16x72xf32>, vector<72x768xf32>, vector<16x768xf32> -> vector<16x768xf32>
    %c0_78 = arith.constant 0 : index
    %c0_79 = arith.constant 0 : index
    %57 = vector.load %arg3[%c0_78, %c0_79] : memref<16x1xf32, #tpu.memory_space<vmem>>, vector<16x1xf32>
    %58 = vector.broadcast %57 : vector<16x1xf32> to vector<16x768xf32>
    %59 = arith.addf %56, %58 : vector<16x768xf32>
    %60 = vector.extract_strided_slice %59 {offsets = [0, 0], sizes = [16, 384], strides = [1, 1]} : vector<16x768xf32> to vector<16x384xf32>
    %c0_80 = arith.constant 0 : index
    %c0_81 = arith.constant 0 : index
    %c0_82 = arith.constant 0 : index
    %61 = vector.load %arg4[%c0_80, %c0_81, %c0_82] : memref<2x16x384xf32, #tpu.memory_space<vmem>>, vector<1x16x384xf32>
    %62 = vector.shape_cast %61 : vector<1x16x384xf32> to vector<16x384xf32>
    %63 = vector.shape_cast %60 : vector<16x384xf32> to vector<1x16x384xf32>
    tpu.vector_store %arg4[%c0_80, %c0_81, %c0_82], %63 {strides = array<i32>} : memref<2x16x384xf32, #tpu.memory_space<vmem>>, vector<1x16x384xf32>,
    %64 = vector.extract_strided_slice %59 {offsets = [0, 384], sizes = [16, 384], strides = [1, 1]} : vector<16x768xf32> to vector<16x384xf32>
    %c1_83 = arith.constant 1 : index
    %c0_84 = arith.constant 0 : index
    %c0_85 = arith.constant 0 : index
    %65 = vector.load %arg4[%c1_83, %c0_84, %c0_85] : memref<2x16x384xf32, #tpu.memory_space<vmem>>, vector<1x16x384xf32>
    %66 = vector.shape_cast %65 : vector<1x16x384xf32> to vector<16x384xf32>
    %67 = vector.shape_cast %64 : vector<16x384xf32> to vector<1x16x384xf32>
    tpu.vector_store %arg4[%c1_83, %c0_84, %c0_85], %67 {strides = array<i32>} : memref<2x16x384xf32, #tpu.memory_space<vmem>>, vector<1x16x384xf32>,
    return
  }
  func.func @transform_0(%arg0: i32) -> (i32, i32, i32) {
    %c0_i32 = arith.constant 0 : i32
    %c0_i32_0 = arith.constant 0 : i32
    %c0_i32_1 = arith.constant 0 : i32
    return %arg0, %c0_i32, %c0_i32_0 : i32, i32, i32
  }
  func.func @transform_1(%arg0: i32) -> (i32, i32) {
    %c0_i32 = arith.constant 0 : i32
    %c0_i32_0 = arith.constant 0 : i32
    %c0_i32_1 = arith.constant 0 : i32
    return %c0_i32, %c0_i32_0 : i32, i32
  }
  func.func @transform_2(%arg0: i32) -> (i32, i32) {
    %c0_i32 = arith.constant 0 : i32
    %c0_i32_0 = arith.constant 0 : i32
    %c0_i32_1 = arith.constant 0 : i32
    return %c0_i32, %c0_i32_0 : i32, i32
  }
  func.func @transform_3(%arg0: i32) -> (i32, i32, i32) {
    %c0_i32 = arith.constant 0 : i32
    %c0_i32_0 = arith.constant 0 : i32
    %c0_i32_1 = arith.constant 0 : i32
    return %arg0, %c0_i32, %c0_i32_0 : i32, i32, i32
  }
}

</mosaic_0001>

<llo_original>
// kernel: upsample_block.1
$region0: #{upsample_block.1}
  #allocation0 [shape = 'u32[]', space=smem, size = 0x4, offset = 0x4, fixed_abs, tag = 'smem constant byte address 0x4 - core index']
  #allocation1 [shape = 'u32[144,128]{1,0:T(1,128)}', space=vmem, size = 0x12000, scoped, tag = 'internal scratch']
  #allocation2 [shape = 'f32[72,768]{1,0:T(8,128)}', space=vmem, size = 0x36000, scoped, tag = 'scratch operand']
  %s0 = inlined_call_operand.vmem [shape: f32[2,8,456], index: 0, kind: input, shape index: {}]
  %s1 = inlined_call_operand.vmem [shape: f32[16,72], index: 1, kind: input, shape index: {}]
  %s2 = inlined_call_operand.vmem [shape: f32[16,1], index: 2, kind: input, shape index: {}]
  %s3 = inlined_call_operand.vmem [shape: f32[2,16,384], index: 3, kind: output, shape index: {}]
  %s4 = sld [smem:[#allocation0]]
  $region22: #{upsample_block.1} parent=0
    _
  %s6 = ssub.s32 1, %s4
  %s7 = scalar_select 0, %s6, %s4
  // Predicated region
  $region2: #{upsample_block.1} parent=0 // pred_check
    _
  $region3: #{upsample_block.1} parent=0 // pred_check_branch
    %9 = sbr.rel (0) target = $region5
  $region4: #{upsample_block.1} parent=0 // pred_region
    _
  $region5: #{upsample_block.1} parent=0 // pred_fallthru
    _
  // Predicated region
  $region6: #{upsample_block.1} parent=0 // pred_check
    _
  $region7: #{upsample_block.1} parent=0 // pred_check_branch
    %11 = sbr.rel (0) target = $region9
  $region8: #{upsample_block.1} parent=0 // pred_region
    _
  $region9: #{upsample_block.1} parent=0 // pred_fallthru
    _
  // Predicated region
  $region10: #{upsample_block.1} parent=0 // pred_check
    _
  $region11: #{upsample_block.1} parent=0 // pred_check_branch
    %13 = sbr.rel (0) target = $region13
  $region12: #{upsample_block.1} parent=0 // pred_region
    _
  $region13: #{upsample_block.1} parent=0 // pred_fallthru
    _
  %v14 = vld [vmem:[%s0] sm:$0xff]
  %v15 = vld [vmem:[%s0 + $0x8] sm:$0xff]
  %v16 = vld [vmem:[%s0 + $0x10] sm:$0xff]
  %17 = vst [vmem:[#allocation2] sm:$0xff] %v14
  %18 = vst [vmem:[#allocation2 + $0x8] sm:$0xff] %v15
  %19 = vst [vmem:[#allocation2 + $0x10] sm:$0xff] %v16
  %v20 = vld [vmem:[%s0] sm:$0xff]
  %v21 = vld [vmem:[%s0 + $0x8] sm:$0xff]
  %v22 = vld [vmem:[%s0 + $0x10] sm:$0xff]
  %v23 = vld [vmem:[%s0 + $0x18] sm:$0xff]
  %28 = vrot.lane.b32.xlu0 %v20, 127
  %v29 = vpop.permute.xlu0 %28
  %30 = vrot.lane.b32.xlu0 %v21, 127
  %v31 = vpop.permute.xlu0 %30
  %32 = vrot.lane.b32.xlu0 %v22, 127
  %v33 = vpop.permute.xlu0 %32
  %34 = vrot.lane.b32.xlu0 %v23, 127
  %v35 = vpop.permute.xlu0 %34
  %vm36 = vcmask 1039360
  %v37 = vsel %vm36, %v29, %v31
  %v38 = vsel %vm36, %v31, %v33
  %v39 = vsel %vm36, %v33, %v35
  %43 = vst [vmem:[#allocation2 + $0x30] sm:$0xff] %v37
  %44 = vst [vmem:[#allocation2 + $0x38] sm:$0xff] %v38
  %45 = vst [vmem:[#allocation2 + $0x40] sm:$0xff] %v39
  %v46 = vld [vmem:[%s0] sm:$0xff]
  %v47 = vld [vmem:[%s0 + $0x8] sm:$0xff]
  %v48 = vld [vmem:[%s0 + $0x10] sm:$0xff]
  %v49 = vld [vmem:[%s0 + $0x18] sm:$0xff]
  %54 = vrot.lane.b32.xlu0 %v46, 126
  %v55 = vpop.permute.xlu0 %54
  %56 = vrot.lane.b32.xlu0 %v47, 126
  %v57 = vpop.permute.xlu0 %56
  %58 = vrot.lane.b32.xlu0 %v48, 126
  %v59 = vpop.permute.xlu0 %58
  %60 = vrot.lane.b32.xlu0 %v49, 126
  %v61 = vpop.permute.xlu0 %60
  %vm62 = vcmask 1031168
  %v63 = vsel %vm62, %v55, %v57
  %v64 = vsel %vm62, %v57, %v59
  %v65 = vsel %vm62, %v59, %v61
  %69 = vst [vmem:[#allocation2 + $0x60] sm:$0xff] %v63
  %70 = vst [vmem:[#allocation2 + $0x68] sm:$0xff] %v64
  %71 = vst [vmem:[#allocation2 + $0x70] sm:$0xff] %v65
  %v72 = vld [vmem:[%s0] sm:$0xff]
  %v73 = vld [vmem:[%s0 + $0x8] sm:$0xff]
  %v74 = vld [vmem:[%s0 + $0x10] sm:$0xff]
  %v75 = vld [vmem:[%s0 + $0x18] sm:$0xff]
  %80 = vrot.lane.b32.xlu0 %v72, 104
  %v81 = vpop.permute.xlu0 %80
  %82 = vrot.lane.b32.xlu0 %v73, 104
  %v83 = vpop.permute.xlu0 %82
  %84 = vrot.lane.b32.xlu0 %v74, 104
  %v85 = vpop.permute.xlu0 %84
  %86 = vrot.lane.b32.xlu0 %v75, 104
  %v87 = vpop.permute.xlu0 %86
  %vm88 = vcmask 850944
  %v89 = vsel %vm88, %v81, %v83
  %v90 = vsel %vm88, %v83, %v85
  %v91 = vsel %vm88, %v85, %v87
  %95 = vst [vmem:[#allocation2 + $0x90] sm:$0xff] %v89
  %96 = vst [vmem:[#allocation2 + $0x98] sm:$0xff] %v90
  %97 = vst [vmem:[#allocation2 + $0xa0] sm:$0xff] %v91
  %v98 = vld [vmem:[%s0] sm:$0xff]
  %v99 = vld [vmem:[%s0 + $0x8] sm:$0xff]
  %v100 = vld [vmem:[%s0 + $0x10] sm:$0xff]
  %v101 = vld [vmem:[%s0 + $0x18] sm:$0xff]
  %106 = vrot.lane.b32.xlu0 %v98, 103
  %v107 = vpop.permute.xlu0 %106
  %108 = vrot.lane.b32.xlu0 %v99, 103
  %v109 = vpop.permute.xlu0 %108
  %110 = vrot.lane.b32.xlu0 %v100, 103
  %v111 = vpop.permute.xlu0 %110
  %112 = vrot.lane.b32.xlu0 %v101, 103
  %v113 = vpop.permute.xlu0 %112
  %vm114 = vcmask 842752
  %v115 = vsel %vm114, %v107, %v109
  %v116 = vsel %vm114, %v109, %v111
  %v117 = vsel %vm114, %v111, %v113
  %121 = vst [vmem:[#allocation2 + $0xc0] sm:$0xff] %v115
  %122 = vst [vmem:[#allocation2 + $0xc8] sm:$0xff] %v116
  %123 = vst [vmem:[#allocation2 + $0xd0] sm:$0xff] %v117
  %v124 = vld [vmem:[%s0] sm:$0xff]
  %v125 = vld [vmem:[%s0 + $0x8] sm:$0xff]
  %v126 = vld [vmem:[%s0 + $0x10] sm:$0xff]
  %v127 = vld [vmem:[%s0 + $0x18] sm:$0xff]
  %132 = vrot.lane.b32.xlu0 %v124, 102
  %v133 = vpop.permute.xlu0 %132
  %134 = vrot.lane.b32.xlu0 %v125, 102
  %v135 = vpop.permute.xlu0 %134
  %136 = vrot.lane.b32.xlu0 %v126, 102
  %v137 = vpop.permute.xlu0 %136
  %138 = vrot.lane.b32.xlu0 %v127, 102
  %v139 = vpop.permute.xlu0 %138
  %vm140 = vcmask 834560
  %v141 = vsel %vm140, %v133, %v135
  %v142 = vsel %vm140, %v135, %v137
  %v143 = vsel %vm140, %v137, %v139
  %147 = vst [vmem:[#allocation2 + $0xf0] sm:$0xff] %v141
  %148 = vst [vmem:[#allocation2 + $0xf8] sm:$0xff] %v142
  %149 = vst [vmem:[#allocation2 + $0x100] sm:$0xff] %v143
  %v150 = vld [vmem:[%s0] sm:$0xff]
  %v151 = vld [vmem:[%s0 + $0x8] sm:$0xff]
  %v152 = vld [vmem:[%s0 + $0x10] sm:$0xff]
  %v153 = vld [vmem:[%s0 + $0x18] sm:$0xff]
  %158 = vrot.lane.b32.xlu0 %v150, 80
  %v159 = vpop.permute.xlu0 %158
  %160 = vrot.lane.b32.xlu0 %v151, 80
  %v161 = vpop.permute.xlu0 %160
  %162 = vrot.lane.b32.xlu0 %v152, 80
  %v163 = vpop.permute.xlu0 %162
  %164 = vrot.lane.b32.xlu0 %v153, 80
  %v165 = vpop.permute.xlu0 %164
  %vm166 = vcmask 654336
  %v167 = vsel %vm166, %v159, %v161
  %v168 = vsel %vm166, %v161, %v163
  %v169 = vsel %vm166, %v163, %v165
  %173 = vst [vmem:[#allocation2 + $0x120] sm:$0xff] %v167
  %174 = vst [vmem:[#allocation2 + $0x128] sm:$0xff] %v168
  %175 = vst [vmem:[#allocation2 + $0x130] sm:$0xff] %v169
  %v176 = vld [vmem:[%s0] sm:$0xff]
  %v177 = vld [vmem:[%s0 + $0x8] sm:$0xff]
  %v178 = vld [vmem:[%s0 + $0x10] sm:$0xff]
  %v179 = vld [vmem:[%s0 + $0x18] sm:$0xff]
  %184 = vrot.lane.b32.xlu0 %v176, 79
  %v185 = vpop.permute.xlu0 %184
  %186 = vrot.lane.b32.xlu0 %v177, 79
  %v187 = vpop.permute.xlu0 %186
  %188 = vrot.lane.b32.xlu0 %v178, 79
  %v189 = vpop.permute.xlu0 %188
  %190 = vrot.lane.b32.xlu0 %v179, 79
  %v191 = vpop.permute.xlu0 %190
  %vm192 = vcmask 646144
  %v193 = vsel %vm192, %v185, %v187
  %v194 = vsel %vm192, %v187, %v189
  %v195 = vsel %vm192, %v189, %v191
  %199 = vst [vmem:[#allocation2 + $0x150] sm:$0xff] %v193
  %200 = vst [vmem:[#allocation2 + $0x158] sm:$0xff] %v194
  %201 = vst [vmem:[#allocation2 + $0x160] sm:$0xff] %v195
  %v202 = vld [vmem:[%s0] sm:$0xff]
  %v203 = vld [vmem:[%s0 + $0x8] sm:$0xff]
  %v204 = vld [vmem:[%s0 + $0x10] sm:$0xff]
  %v205 = vld [vmem:[%s0 + $0x18] sm:$0xff]
  %210 = vrot.lane.b32.xlu0 %v202, 78
  %v211 = vpop.permute.xlu0 %210
  %212 = vrot.lane.b32.xlu0 %v203, 78
  %v213 = vpop.permute.xlu0 %212
  %214 = vrot.lane.b32.xlu0 %v204, 78
  %v215 = vpop.permute.xlu0 %214
  %216 = vrot.lane.b32.xlu0 %v205, 78
  %v217 = vpop.permute.xlu0 %216
  %vm218 = vcmask 637952
  %v219 = vsel %vm218, %v211, %v213
  %v220 = vsel %vm218, %v213, %v215
  %v221 = vsel %vm218, %v215, %v217
  %225 = vst [vmem:[#allocation2 + $0x180] sm:$0xff] %v219
  %226 = vst [vmem:[#allocation2 + $0x188] sm:$0xff] %v220
  %227 = vst [vmem:[#allocation2 + $0x190] sm:$0xff] %v221
  %s228 = scalar_lea.vmem %s0, 32
  %v229 = vld [vmem:[%s228] sm:$0xff]
  %v230 = vld [vmem:[%s228 + $0x8] sm:$0xff]
  %v231 = vld [vmem:[%s228 + $0x10] sm:$0xff]
  %232 = vst [vmem:[#allocation2 + $0x18] sm:$0xff] %v229
  %233 = vst [vmem:[#allocation2 + $0x20] sm:$0xff] %v230
  %234 = vst [vmem:[#allocation2 + $0x28] sm:$0xff] %v231
  %v235 = vld [vmem:[%s228] sm:$0xff]
  %v236 = vld [vmem:[%s228 + $0x8] sm:$0xff]
  %v237 = vld [vmem:[%s228 + $0x10] sm:$0xff]
  %v238 = vld [vmem:[%s228 + $0x18] sm:$0xff]
  %243 = vrot.lane.b32.xlu0 %v235, 127
  %v244 = vpop.permute.xlu0 %243
  %245 = vrot.lane.b32.xlu0 %v236, 127
  %v246 = vpop.permute.xlu0 %245
  %247 = vrot.lane.b32.xlu0 %v237, 127
  %v248 = vpop.permute.xlu0 %247
  %249 = vrot.lane.b32.xlu0 %v238, 127
  %v250 = vpop.permute.xlu0 %249
  %v251 = vsel %vm36, %v244, %v246
  %v252 = vsel %vm36, %v246, %v248
  %v253 = vsel %vm36, %v248, %v250
  %257 = vst [vmem:[#allocation2 + $0x48] sm:$0xff] %v251
  %258 = vst [vmem:[#allocation2 + $0x50] sm:$0xff] %v252
  %259 = vst [vmem:[#allocation2 + $0x58] sm:$0xff] %v253
  %v260 = vld [vmem:[%s228] sm:$0xff]
  %v261 = vld [vmem:[%s228 + $0x8] sm:$0xff]
  %v262 = vld [vmem:[%s228 + $0x10] sm:$0xff]
  %v263 = vld [vmem:[%s228 + $0x18] sm:$0xff]
  %268 = vrot.lane.b32.xlu0 %v260, 126
  %v269 = vpop.permute.xlu0 %268
  %270 = vrot.lane.b32.xlu0 %v261, 126
  %v271 = vpop.permute.xlu0 %270
  %272 = vrot.lane.b32.xlu0 %v262, 126
  %v273 = vpop.permute.xlu0 %272
  %274 = vrot.lane.b32.xlu0 %v263, 126
  %v275 = vpop.permute.xlu0 %274
  %v276 = vsel %vm62, %v269, %v271
  %v277 = vsel %vm62, %v271, %v273
  %v278 = vsel %vm62, %v273, %v275
  %282 = vst [vmem:[#allocation2 + $0x78] sm:$0xff] %v276
  %283 = vst [vmem:[#allocation2 + $0x80] sm:$0xff] %v277
  %284 = vst [vmem:[#allocation2 + $0x88] sm:$0xff] %v278
  %v285 = vld [vmem:[%s228] sm:$0xff]
  %v286 = vld [vmem:[%s228 + $0x8] sm:$0xff]
  %v287 = vld [vmem:[%s228 + $0x10] sm:$0xff]
  %v288 = vld [vmem:[%s228 + $0x18] sm:$0xff]
  %293 = vrot.lane.b32.xlu0 %v285, 104
  %v294 = vpop.permute.xlu0 %293
  %295 = vrot.lane.b32.xlu0 %v286, 104
  %v296 = vpop.permute.xlu0 %295
  %297 = vrot.lane.b32.xlu0 %v287, 104
  %v298 = vpop.permute.xlu0 %297
  %299 = vrot.lane.b32.xlu0 %v288, 104
  %v300 = vpop.permute.xlu0 %299
  %v301 = vsel %vm88, %v294, %v296
  %v302 = vsel %vm88, %v296, %v298
  %v303 = vsel %vm88, %v298, %v300
  %307 = vst [vmem:[#allocation2 + $0xa8] sm:$0xff] %v301
  %308 = vst [vmem:[#allocation2 + $0xb0] sm:$0xff] %v302
  %309 = vst [vmem:[#allocation2 + $0xb8] sm:$0xff] %v303
  %v310 = vld [vmem:[%s228] sm:$0xff]
  %v311 = vld [vmem:[%s228 + $0x8] sm:$0xff]
  %v312 = vld [vmem:[%s228 + $0x10] sm:$0xff]
  %v313 = vld [vmem:[%s228 + $0x18] sm:$0xff]
  %318 = vrot.lane.b32.xlu0 %v310, 103
  %v319 = vpop.permute.xlu0 %318
  %320 = vrot.lane.b32.xlu0 %v311, 103
  %v321 = vpop.permute.xlu0 %320
  %322 = vrot.lane.b32.xlu0 %v312, 103
  %v323 = vpop.permute.xlu0 %322
  %324 = vrot.lane.b32.xlu0 %v313, 103
  %v325 = vpop.permute.xlu0 %324
  %v326 = vsel %vm114, %v319, %v321
  %v327 = vsel %vm114, %v321, %v323
  %v328 = vsel %vm114, %v323, %v325
  %332 = vst [vmem:[#allocation2 + $0xd8] sm:$0xff] %v326
  %333 = vst [vmem:[#allocation2 + $0xe0] sm:$0xff] %v327
  %334 = vst [vmem:[#allocation2 + $0xe8] sm:$0xff] %v328
  %v335 = vld [vmem:[%s228] sm:$0xff]
  %v336 = vld [vmem:[%s228 + $0x8] sm:$0xff]
  %v337 = vld [vmem:[%s228 + $0x10] sm:$0xff]
  %v338 = vld [vmem:[%s228 + $0x18] sm:$0xff]
  %343 = vrot.lane.b32.xlu0 %v335, 102
  %v344 = vpop.permute.xlu0 %343
  %345 = vrot.lane.b32.xlu0 %v336, 102
  %v346 = vpop.permute.xlu0 %345
  %347 = vrot.lane.b32.xlu0 %v337, 102
  %v348 = vpop.permute.xlu0 %347
  %349 = vrot.lane.b32.xlu0 %v338, 102
  %v350 = vpop.permute.xlu0 %349
  %v351 = vsel %vm140, %v344, %v346
  %v352 = vsel %vm140, %v346, %v348
  %v353 = vsel %vm140, %v348, %v350
  %357 = vst [vmem:[#allocation2 + $0x108] sm:$0xff] %v351
  %358 = vst [vmem:[#allocation2 + $0x110] sm:$0xff] %v352
  %359 = vst [vmem:[#allocation2 + $0x118] sm:$0xff] %v353
  %v360 = vld [vmem:[%s228] sm:$0xff]
  %v361 = vld [vmem:[%s228 + $0x8] sm:$0xff]
  %v362 = vld [vmem:[%s228 + $0x10] sm:$0xff]
  %v363 = vld [vmem:[%s228 + $0x18] sm:$0xff]
  %368 = vrot.lane.b32.xlu0 %v360, 80
  %v369 = vpop.permute.xlu0 %368
  %370 = vrot.lane.b32.xlu0 %v361, 80
  %v371 = vpop.permute.xlu0 %370
  %372 = vrot.lane.b32.xlu0 %v362, 80
  %v373 = vpop.permute.xlu0 %372
  %374 = vrot.lane.b32.xlu0 %v363, 80
  %v375 = vpop.permute.xlu0 %374
  %v376 = vsel %vm166, %v369, %v371
  %v377 = vsel %vm166, %v371, %v373
  %v378 = vsel %vm166, %v373, %v375
  %382 = vst [vmem:[#allocation2 + $0x138] sm:$0xff] %v376
  %383 = vst [vmem:[#allocation2 + $0x140] sm:$0xff] %v377
  %384 = vst [vmem:[#allocation2 + $0x148] sm:$0xff] %v378
  %v385 = vld [vmem:[%s228] sm:$0xff]
  %v386 = vld [vmem:[%s228 + $0x8] sm:$0xff]
  %v387 = vld [vmem:[%s228 + $0x10] sm:$0xff]
  %v388 = vld [vmem:[%s228 + $0x18] sm:$0xff]
  %393 = vrot.lane.b32.xlu0 %v385, 79
  %v394 = vpop.permute.xlu0 %393
  %395 = vrot.lane.b32.xlu0 %v386, 79
  %v396 = vpop.permute.xlu0 %395
  %397 = vrot.lane.b32.xlu0 %v387, 79
  %v398 = vpop.permute.xlu0 %397
  %399 = vrot.lane.b32.xlu0 %v388, 79
  %v400 = vpop.permute.xlu0 %399
  %v401 = vsel %vm192, %v394, %v396
  %v402 = vsel %vm192, %v396, %v398
  %v403 = vsel %vm192, %v398, %v400
  %407 = vst [vmem:[#allocation2 + $0x168] sm:$0xff] %v401
  %408 = vst [vmem:[#allocation2 + $0x170] sm:$0xff] %v402
  %409 = vst [vmem:[#allocation2 + $0x178] sm:$0xff] %v403
  %v410 = vld [vmem:[%s228] sm:$0xff]
  %v411 = vld [vmem:[%s228 + $0x8] sm:$0xff]
  %v412 = vld [vmem:[%s228 + $0x10] sm:$0xff]
  %v413 = vld [vmem:[%s228 + $0x18] sm:$0xff]
  %418 = vrot.lane.b32.xlu0 %v410, 78
  %v419 = vpop.permute.xlu0 %418
  %420 = vrot.lane.b32.xlu0 %v411, 78
  %v421 = vpop.permute.xlu0 %420
  %422 = vrot.lane.b32.xlu0 %v412, 78
  %v423 = vpop.permute.xlu0 %422
  %424 = vrot.lane.b32.xlu0 %v413, 78
  %v425 = vpop.permute.xlu0 %424
  %v426 = vsel %vm218, %v419, %v421
  %v427 = vsel %vm218, %v421, %v423
  %v428 = vsel %vm218, %v423, %v425
  %432 = vst [vmem:[#allocation2 + $0x198] sm:$0xff] %v426
  %433 = vst [vmem:[#allocation2 + $0x1a0] sm:$0xff] %v427
  %434 = vst [vmem:[#allocation2 + $0x1a8] sm:$0xff] %v428
  %v435 = vld [vmem:[%s1] sm:$0xff]
  %v436 = vld [vmem:[%s1 + $0x8] sm:$0xff]
  %v437 = vld [vmem:[#allocation2] sm:$0xff]
  %v438 = vld [vmem:[#allocation2 + $0x8] sm:$0xff]
  %v439 = vld [vmem:[#allocation2 + $0x10] sm:$0xff]
  %v440 = vld [vmem:[#allocation2 + $0x18] sm:$0xff]
  %v441 = vld [vmem:[#allocation2 + $0x20] sm:$0xff]
  %v442 = vld [vmem:[#allocation2 + $0x28] sm:$0xff]
  %v443 = vld [vmem:[#allocation2 + $0x30] sm:$0xff]
  %v444 = vld [vmem:[#allocation2 + $0x38] sm:$0xff]
  %v445 = vld [vmem:[#allocation2 + $0x40] sm:$0xff]
  %v446 = vld [vmem:[#allocation2 + $0x48] sm:$0xff]
  %v447 = vld [vmem:[#allocation2 + $0x50] sm:$0xff]
  %v448 = vld [vmem:[#allocation2 + $0x58] sm:$0xff]
  %v449 = vld [vmem:[#allocation2 + $0x60] sm:$0xff]
  %v450 = vld [vmem:[#allocation2 + $0x68] sm:$0xff]
  %v451 = vld [vmem:[#allocation2 + $0x70] sm:$0xff]
  %v452 = vld [vmem:[#allocation2 + $0x78] sm:$0xff]
  %v453 = vld [vmem:[#allocation2 + $0x80] sm:$0xff]
  %v454 = vld [vmem:[#allocation2 + $0x88] sm:$0xff]
  %v455 = vld [vmem:[#allocation2 + $0x90] sm:$0xff]
  %v456 = vld [vmem:[#allocation2 + $0x98] sm:$0xff]
  %v457 = vld [vmem:[#allocation2 + $0xa0] sm:$0xff]
  %v458 = vld [vmem:[#allocation2 + $0xa8] sm:$0xff]
  %v459 = vld [vmem:[#allocation2 + $0xb0] sm:$0xff]
  %v460 = vld [vmem:[#allocation2 + $0xb8] sm:$0xff]
  %v461 = vld [vmem:[#allocation2 + $0xc0] sm:$0xff]
  %v462 = vld [vmem:[#allocation2 + $0xc8] sm:$0xff]
  %v463 = vld [vmem:[#allocation2 + $0xd0] sm:$0xff]
  %v464 = vld [vmem:[#allocation2 + $0xd8] sm:$0xff]
  %v465 = vld [vmem:[#allocation2 + $0xe0] sm:$0xff]
  %v466 = vld [vmem:[#allocation2 + $0xe8] sm:$0xff]
  %v467 = vld [vmem:[#allocation2 + $0xf0] sm:$0xff]
  %v468 = vld [vmem:[#allocation2 + $0xf8] sm:$0xff]
  %v469 = vld [vmem:[#allocation2 + $0x100] sm:$0xff]
  %v470 = vld [vmem:[#allocation2 + $0x108] sm:$0xff]
  %v471 = vld [vmem:[#allocation2 + $0x110] sm:$0xff]
  %v472 = vld [vmem:[#allocation2 + $0x118] sm:$0xff]
  %v473 = vld [vmem:[#allocation2 + $0x120] sm:$0xff]
  %v474 = vld [vmem:[#allocation2 + $0x128] sm:$0xff]
  %v475 = vld [vmem:[#allocation2 + $0x130] sm:$0xff]
  %v476 = vld [vmem:[#allocation2 + $0x138] sm:$0xff]
  %v477 = vld [vmem:[#allocation2 + $0x140] sm:$0xff]
  %v478 = vld [vmem:[#allocation2 + $0x148] sm:$0xff]
  %v479 = vld [vmem:[#allocation2 + $0x150] sm:$0xff]
  %v480 = vld [vmem:[#allocation2 + $0x158] sm:$0xff]
  %v481 = vld [vmem:[#allocation2 + $0x160] sm:$0xff]
  %v482 = vld [vmem:[#allocation2 + $0x168] sm:$0xff]
  %v483 = vld [vmem:[#allocation2 + $0x170] sm:$0xff]
  %v484 = vld [vmem:[#allocation2 + $0x178] sm:$0xff]
  %v485 = vld [vmem:[#allocation2 + $0x180] sm:$0xff]
  %v486 = vld [vmem:[#allocation2 + $0x188] sm:$0xff]
  %v487 = vld [vmem:[#allocation2 + $0x190] sm:$0xff]
  %v488 = vld [vmem:[#allocation2 + $0x198] sm:$0xff]
  %v489 = vld [vmem:[#allocation2 + $0x1a0] sm:$0xff]
  %v490 = vld [vmem:[#allocation2 + $0x1a8] sm:$0xff]
  %v491 = vld [vmem:[%s2] sm:$0xff]
  %v492 = vld [vmem:[%s2 + $0x8] sm:$0xff]
  %494 = vset.pattern.permute.xlu0 0
  %495 = vperm.xlu0 %494, %v491
  %v496 = vpop.permute.xlu0 %495
  %499 = vset.pattern.permute.xlu0 0
  %500 = vperm.xlu0 %499, %v492
  %v501 = vpop.permute.xlu0 %500
  %vm503 = vcmask 588800
  %v505 = vsel %vm503, %v435, 0
  %v508 = vsel %vm503, %v436, 0
  %510 = vmatprep.subr.mxu0 %v438
  %511 = vmatpush1.msra.mxu0 %v437
  %512 = vmatprep.subr.mxu0 %v444
  %513 = vmatpush1.msra.mxu0 %v443
  %514 = vmatprep.subr.mxu0 %v450
  %515 = vmatpush1.msra.mxu0 %v449
  %516 = vmatprep.subr.mxu0 %v456
  %517 = vmatpush1.msra.mxu0 %v455
  %518 = vmatprep.subr.mxu0 %v462
  %519 = vmatpush1.msra.mxu0 %v461
  %520 = vmatprep.subr.mxu0 %v468
  %521 = vmatpush1.msra.mxu0 %v467
  %522 = vmatprep.subr.mxu0 %v474
  %523 = vmatpush1.msra.mxu0 %v473
  %524 = vmatprep.subr.mxu0 %v480
  %525 = vmatpush1.msra.mxu0 %v479
  %526 = vmatprep.subr.mxu0 %v486
  %527 = vmatpush1.msra.mxu0 %v485
  %528 = vmatprep.subr.mxu0 0.0
  %529 = vmatpush1.msra.mxu0 0.0
  %530 = vmatprep.subr.mxu0 0.0
  %531 = vmatpush1.msra.mxu0 0.0
  %532 = vmatprep.subr.mxu0 0.0
  %533 = vmatpush1.msra.mxu0 0.0
  %534 = vmatprep.subr.mxu0 0.0
  %535 = vmatpush1.msra.mxu0 0.0
  %536 = vmatprep.subr.mxu0 0.0
  %537 = vmatpush1.msra.mxu0 0.0
  %538 = vmatprep.subr.mxu0 0.0
  %539 = vmatpush1.msra.mxu0 0.0
  %540 = vmatprep.subr.mxu0 0.0
  %541 = vmatpush1.msra.mxu0 0.0
  %542 = vmatprep.subr.mxu0 0.0
  %543 = vmatpush1.msra.mxu0 0.0
  %544 = vmatprep.subr.mxu0 0.0
  %545 = vmatpush1.msra.mxu0 0.0
  %546 = vmatprep.subr.mxu0 0.0
  %547 = vmatpush1.msra.mxu0 0.0
  %548 = vmatprep.subr.mxu0 0.0
  %549 = vmatpush1.msra.mxu0 0.0
  %550 = vmatprep.subr.mxu0 0.0
  %551 = vmatpush1.msra.mxu0 0.0
  %552 = vmatprep.subr.mxu0 0.0
  %553 = vmatpush1.msra.mxu0 0.0
  %554 = vmatprep.subr.mxu0 0.0
  %555 = vmatpush1.msra.mxu0 0.0
  %556 = vmatprep.subr.mxu0 0.0
  %557 = vmatpush1.msra.mxu0 0.0
  %558 = vmatprep.subr.mxu0 0.0
  %559 = vmatpush1.msra.mxu0 0.0
  %560 = vmatprep.subr.mxu0 0.0
  %561 = vmatpush1.msra.mxu0 0.0
  %562 = vmatprep.subr.mxu0 0.0
  %563 = vmatpush1.msra.mxu0 0.0
  %564 = vmatprep.subr.mxu0 0.0
  %565 = vmatpush1.msra.mxu0 0.0
  %566 = vmatprep.subr.mxu0 0.0
  %567 = vmatpush1.msra.mxu0 0.0
  %568 = vmatprep.subr.mxu0 0.0
  %569 = vmatpush1.msra.mxu0 0.0
  %570 = vmatprep.subr.mxu0 0.0
  %571 = vmatpush1.msra.mxu0 0.0
  %572 = vmatprep.subr.mxu0 0.0
  %573 = vmatpush1.msra.mxu0 0.0
  %574 = vmatprep.mubr.f32.mxu0 0.0
  %575 = vmatmul.mubr.f32.gmra.mrb[0].mxu0 %v505
  %v576 = vpop.f32.mrb[0].mxu0
  %v577 = vadd.f32 %v496, %v576
  %v578 = vpop.f32.mrb[0].mxu0
  %v579 = vadd.f32 %v496, %v578
  %580 = vmatprep.mubr.f32.mxu0 0.0
  %581 = vmatmul.mubr.f32.gmra.mrb[0].mxu0 %v508
  %v582 = vpop.f32.mrb[0].mxu0
  %v583 = vadd.f32 %v501, %v582
  %v584 = vpop.f32.mrb[0].mxu0
  %v585 = vadd.f32 %v501, %v584
  %586 = vdwg.mxu0
  %587 = vmatprep.subr.mxu0 %v440
  %588 = vmatpush1.msra.mxu0 %v439
  %589 = vmatprep.subr.mxu0 %v446
  %590 = vmatpush1.msra.mxu0 %v445
  %591 = vmatprep.subr.mxu0 %v452
  %592 = vmatpush1.msra.mxu0 %v451
  %593 = vmatprep.subr.mxu0 %v458
  %594 = vmatpush1.msra.mxu0 %v457
  %595 = vmatprep.subr.mxu0 %v464
  %596 = vmatpush1.msra.mxu0 %v463
  %597 = vmatprep.subr.mxu0 %v470
  %598 = vmatpush1.msra.mxu0 %v469
  %599 = vmatprep.subr.mxu0 %v476
  %600 = vmatpush1.msra.mxu0 %v475
  %601 = vmatprep.subr.mxu0 %v482
  %602 = vmatpush1.msra.mxu0 %v481
  %603 = vmatprep.subr.mxu0 %v488
  %604 = vmatpush1.msra.mxu0 %v487
  %605 = vmatprep.subr.mxu0 0.0
  %606 = vmatpush1.msra.mxu0 0.0
  %607 = vmatprep.subr.mxu0 0.0
  %608 = vmatpush1.msra.mxu0 0.0
  %609 = vmatprep.subr.mxu0 0.0
  %610 = vmatpush1.msra.mxu0 0.0
  %611 = vmatprep.subr.mxu0 0.0
  %612 = vmatpush1.msra.mxu0 0.0
  %613 = vmatprep.subr.mxu0 0.0
  %614 = vmatpush1.msra.mxu0 0.0
  %615 = vmatprep.subr.mxu0 0.0
  %616 = vmatpush1.msra.mxu0 0.0
  %617 = vmatprep.subr.mxu0 0.0
  %618 = vmatpush1.msra.mxu0 0.0
  %619 = vmatprep.subr.mxu0 0.0
  %620 = vmatpush1.msra.mxu0 0.0
  %621 = vmatprep.subr.mxu0 0.0
  %622 = vmatpush1.msra.mxu0 0.0
  %623 = vmatprep.subr.mxu0 0.0
  %624 = vmatpush1.msra.mxu0 0.0
  %625 = vmatprep.subr.mxu0 0.0
  %626 = vmatpush1.msra.mxu0 0.0
  %627 = vmatprep.subr.mxu0 0.0
  %628 = vmatpush1.msra.mxu0 0.0
  %629 = vmatprep.subr.mxu0 0.0
  %630 = vmatpush1.msra.mxu0 0.0
  %631 = vmatprep.subr.mxu0 0.0
  %632 = vmatpush1.msra.mxu0 0.0
  %633 = vmatprep.subr.mxu0 0.0
  %634 = vmatpush1.msra.mxu0 0.0
  %635 = vmatprep.subr.mxu0 0.0
  %636 = vmatpush1.msra.mxu0 0.0
  %637 = vmatprep.subr.mxu0 0.0
  %638 = vmatpush1.msra.mxu0 0.0
  %639 = vmatprep.subr.mxu0 0.0
  %640 = vmatpush1.msra.mxu0 0.0
  %641 = vmatprep.subr.mxu0 0.0
  %642 = vmatpush1.msra.mxu0 0.0
  %643 = vmatprep.subr.mxu0 0.0
  %644 = vmatpush1.msra.mxu0 0.0
  %645 = vmatprep.subr.mxu0 0.0
  %646 = vmatpush1.msra.mxu0 0.0
  %647 = vmatprep.subr.mxu0 0.0
  %648 = vmatpush1.msra.mxu0 0.0
  %649 = vmatprep.subr.mxu0 0.0
  %650 = vmatpush1.msra.mxu0 0.0
  %651 = vmatprep.mubr.f32.mxu0 0.0
  %652 = vmatmul.mubr.f32.gmra.mrb[0].mxu0 %v505
  %v653 = vpop.f32.mrb[0].mxu0
  %v654 = vadd.f32 %v496, %v653
  %v655 = vpop.f32.mrb[0].mxu0
  %v656 = vadd.f32 %v496, %v655
  %657 = vmatprep.mubr.f32.mxu0 0.0
  %658 = vmatmul.mubr.f32.gmra.mrb[0].mxu0 %v508
  %v659 = vpop.f32.mrb[0].mxu0
  %v660 = vadd.f32 %v501, %v659
  %v661 = vpop.f32.mrb[0].mxu0
  %v662 = vadd.f32 %v501, %v661
  %663 = vdwg.mxu0
  %664 = vmatprep.subr.mxu0 %v442
  %665 = vmatpush1.msra.mxu0 %v441
  %666 = vmatprep.subr.mxu0 %v448
  %667 = vmatpush1.msra.mxu0 %v447
  %668 = vmatprep.subr.mxu0 %v454
  %669 = vmatpush1.msra.mxu0 %v453
  %670 = vmatprep.subr.mxu0 %v460
  %671 = vmatpush1.msra.mxu0 %v459
  %672 = vmatprep.subr.mxu0 %v466
  %673 = vmatpush1.msra.mxu0 %v465
  %674 = vmatprep.subr.mxu0 %v472
  %675 = vmatpush1.msra.mxu0 %v471
  %676 = vmatprep.subr.mxu0 %v478
  %677 = vmatpush1.msra.mxu0 %v477
  %678 = vmatprep.subr.mxu0 %v484
  %679 = vmatpush1.msra.mxu0 %v483
  %680 = vmatprep.subr.mxu0 %v490
  %681 = vmatpush1.msra.mxu0 %v489
  %682 = vmatprep.subr.mxu0 0.0
  %683 = vmatpush1.msra.mxu0 0.0
  %684 = vmatprep.subr.mxu0 0.0
  %685 = vmatpush1.msra.mxu0 0.0
  %686 = vmatprep.subr.mxu0 0.0
  %687 = vmatpush1.msra.mxu0 0.0
  %688 = vmatprep.subr.mxu0 0.0
  %689 = vmatpush1.msra.mxu0 0.0
  %690 = vmatprep.subr.mxu0 0.0
  %691 = vmatpush1.msra.mxu0 0.0
  %692 = vmatprep.subr.mxu0 0.0
  %693 = vmatpush1.msra.mxu0 0.0
  %694 = vmatprep.subr.mxu0 0.0
  %695 = vmatpush1.msra.mxu0 0.0
  %696 = vmatprep.subr.mxu0 0.0
  %697 = vmatpush1.msra.mxu0 0.0
  %698 = vmatprep.subr.mxu0 0.0
  %699 = vmatpush1.msra.mxu0 0.0
  %700 = vmatprep.subr.mxu0 0.0
  %701 = vmatpush1.msra.mxu0 0.0
  %702 = vmatprep.subr.mxu0 0.0
  %703 = vmatpush1.msra.mxu0 0.0
  %704 = vmatprep.subr.mxu0 0.0
  %705 = vmatpush1.msra.mxu0 0.0
  %706 = vmatprep.subr.mxu0 0.0
  %707 = vmatpush1.msra.mxu0 0.0
  %708 = vmatprep.subr.mxu0 0.0
  %709 = vmatpush1.msra.mxu0 0.0
  %710 = vmatprep.subr.mxu0 0.0
  %711 = vmatpush1.msra.mxu0 0.0
  %712 = vmatprep.subr.mxu0 0.0
  %713 = vmatpush1.msra.mxu0 0.0
  %714 = vmatprep.subr.mxu0 0.0
  %715 = vmatpush1.msra.mxu0 0.0
  %716 = vmatprep.subr.mxu0 0.0
  %717 = vmatpush1.msra.mxu0 0.0
  %718 = vmatprep.subr.mxu0 0.0
  %719 = vmatpush1.msra.mxu0 0.0
  %720 = vmatprep.subr.mxu0 0.0
  %721 = vmatpush1.msra.mxu0 0.0
  %722 = vmatprep.subr.mxu0 0.0
  %723 = vmatpush1.msra.mxu0 0.0
  %724 = vmatprep.subr.mxu0 0.0
  %725 = vmatpush1.msra.mxu0 0.0
  %726 = vmatprep.subr.mxu0 0.0
  %727 = vmatpush1.msra.mxu0 0.0
  %728 = vmatprep.mubr.f32.mxu0 0.0
  %729 = vmatmul.mubr.f32.gmra.mrb[0].mxu0 %v505
  %v730 = vpop.f32.mrb[0].mxu0
  %v731 = vadd.f32 %v496, %v730
  %v732 = vpop.f32.mrb[0].mxu0
  %v733 = vadd.f32 %v496, %v732
  %734 = vmatprep.mubr.f32.mxu0 0.0
  %735 = vmatmul.mubr.f32.gmra.mrb[0].mxu0 %v508
  %v736 = vpop.f32.mrb[0].mxu0
  %v737 = vadd.f32 %v501, %v736
  %v738 = vpop.f32.mrb[0].mxu0
  %v739 = vadd.f32 %v501, %v738
  %740 = vdwg.mxu0
  %741 = vst [vmem:[%s3] sm:$0xff] %v577
  %742 = vst [vmem:[%s3 + $0x8] sm:$0xff] %v579
  %743 = vst [vmem:[%s3 + $0x10] sm:$0xff] %v654
  %744 = vst [vmem:[%s3 + $0x18] sm:$0xff] %v583
  %745 = vst [vmem:[%s3 + $0x20] sm:$0xff] %v585
  %746 = vst [vmem:[%s3 + $0x28] sm:$0xff] %v660
  %s747 = scalar_lea.vmem %s3, 48
  %748 = vst [vmem:[%s747] sm:$0xff] %v656
  %749 = vst [vmem:[%s747 + $0x8] sm:$0xff] %v731
  %750 = vst [vmem:[%s747 + $0x10] sm:$0xff] %v733
  %751 = vst [vmem:[%s747 + $0x18] sm:$0xff] %v662
  %752 = vst [vmem:[%s747 + $0x20] sm:$0xff] %v737
  %753 = vst [vmem:[%s747 + $0x28] sm:$0xff] %v739
  // Predicated region
  $region14: #{upsample_block.1} parent=0 // pred_check
    _
  $region15: #{upsample_block.1} parent=0 // pred_check_branch
    %755 = sbr.rel (0) target = $region17
  $region16: #{upsample_block.1} parent=0 // pred_region
    _
  $region17: #{upsample_block.1} parent=0 // pred_fallthru
    _
  // Predicated region
  $region18: #{upsample_block.1} parent=0 // pred_check
    _
  $region19: #{upsample_block.1} parent=0 // pred_check_branch
    %757 = sbr.rel (0) target = $region21
  $region20: #{upsample_block.1} parent=0 // pred_region
    _
  $region21: #{upsample_block.1} parent=0 // pred_fallthru
    _

</llo_original>
